<compile_context>
chip_gen: v5e
topology: v5e:2x2
jax: 0.10.0
libtpu: 0.0.40
codegen_flags: <defaults>
</compile_context>

<pallas_src>
import functools

import jax
import jax.numpy as jnp
from jax.experimental import pallas as pl
from jax.experimental.pallas import tpu as pltpu


def _round_up(n: int, m: int) -> int:
    return ((n + m - 1) // m) * m


def _cdiv(a: int, b: int) -> int:
    return (a + b - 1) // b


def _pad_dim(d: int) -> int:
    # 256-wide tiles fill the v6e/v7x MXU; 128 is enough for small dims / v5e.
    return _round_up(d, 256) if d >= 256 else _round_up(d, 128)


def _replicated_spec(shape):
    """Whole-array block replicated across the batch grid axis.

    Constant index_map => request single buffering (double-buffering a block
    that never changes only wastes VMEM).  Falls back cleanly if this JAX
    build's BlockSpec has no pipeline_mode kwarg.
    """
    try:
        return pl.BlockSpec(shape, lambda i: (0, 0), pipeline_mode=pl.Buffered(1))
    except TypeError:
        return pl.BlockSpec(shape, lambda i: (0, 0))


def _fnn_fused_kernel(*refs, num_layers: int, compute_dtype):
    """refs = (x_ref, w0, b0, w1, b1, ..., o_ref).

    x_ref: (TB, IN_pad) f32; w_i: (IN_pad_i, OUT_pad_i) bf16 (pre-transposed);
    b_i: (1, OUT_pad_i) f32; o_ref: (TB, OUT_pad_last).  All intermediate
    activations stay in VMEM/vregs -- no HBM round trips between layers.
    """
    x_ref, o_ref = refs[0], refs[-1]
    layer_refs = refs[1:-1]

    h = x_ref[...].astype(compute_dtype)          # bf16 MXU operand
    for i in range(num_layers):
        w = layer_refs[2 * i][...]
        b = layer_refs[2 * i + 1][...]
        # MXU matmul with f32 accumulation; bias add + ReLU on the VPU.
        y = jnp.dot(h, w, preferred_element_type=jnp.float32) + b
        if i < num_layers - 1:
            h = jnp.maximum(y, 0.0).astype(compute_dtype)
        else:
            h = y
    o_ref[...] = h.astype(o_ref.dtype)


def prepare_params(params, *, compute_dtype=jnp.bfloat16):
    """One-time prep: pad feature dims, transpose W to (IN, OUT), cast to bf16.

    params = list of (W, b) with W shaped (out, in) like torch.nn.Linear.
    Returns (flat_params_tuple, out_dim).
    """
    in_dim = params[0][0].shape[1]
    cur_in_pad = _pad_dim(in_dim)
    flat = []
    for w, b in params:
        out_dim, in_d = w.shape
        out_pad = _pad_dim(out_dim)
        wt = jnp.zeros((cur_in_pad, out_pad), compute_dtype)
        wt = wt.at[:in_d, :out_dim].set(w.T.astype(compute_dtype))
        bp = jnp.zeros((1, out_pad), jnp.float32)
        bp = bp.at[0, :out_dim].set(b.astype(jnp.float32))
        flat += [wt, bp]
        cur_in_pad = out_pad
    return tuple(flat), params[-1][0].shape[0]


def _forward_impl(x, flat_params, *, out_dim: int, tile_b: int):
    batch, in_dim = x.shape
    n_layers = len(flat_params) // 2
    in_pad = flat_params[0].shape[0]
    out_pad = flat_params[-2].shape[1]

    # --- Batch tile selection: minimize padding, >=2 tiles when possible so
    # --- the "parallel" axis can shard across v7x's two TensorCores.
    num_tiles = max(1, _cdiv(batch, tile_b))
    if num_tiles == 1 and batch > 8:
        num_tiles = 2
    tb = _round_up(_cdiv(batch, num_tiles), 8)     # multiple of 8 sublanes
    batch_pad = tb * num_tiles

    x_p = jnp.zeros((batch_pad, in_pad), x.dtype).at[:batch, :in_dim].set(x)

    in_specs = [pl.BlockSpec((tb, in_pad), lambda i: (i, 0))]
    for li in range(n_layers):
        in_specs.append(_replicated_spec(flat_params[2 * li].shape))
        in_specs.append(_replicated_spec(flat_params[2 * li + 1].shape))
    out_specs = pl.BlockSpec((tb, out_pad), lambda i: (i, 0))

    # --- VMEM budget: 2x-buffered IO tiles + 1x resident weights + activation headroom.
    nbytes = lambda a: a.size * a.dtype.itemsize
    w_bytes = sum(nbytes(a) for a in flat_params)
    io_bytes = 2 * tb * (in_pad + out_pad) * x.dtype.itemsize
    act_bytes = 2 * tb * max(a.shape[-1] for a in flat_params[0::2]) * 4
    vmem_limit = int(min(64 * 2**20, max(8 * 2**20, 2 * (w_bytes + io_bytes + act_bytes))))
    # TODO(synk): layers whose padded weight exceeds a few MiB should be tiled
    # over N/K (extra grid axis or pltpu.emit_pipeline) instead of whole-resident.

    kernel = functools.partial(
        _fnn_fused_kernel, num_layers=n_layers, compute_dtype=flat_params[0].dtype)

    out = pl.pallas_call(
        kernel,
        out_shape=jax.ShapeDtypeStruct((batch_pad, out_pad), x.dtype),
        grid=(num_tiles,),
        in_specs=in_specs,
        out_specs=out_specs,
        compiler_params=pltpu.CompilerParams(
            dimension_semantics=("parallel",),   # shard row tiles across TCs (v7x)
            vmem_limit_bytes=vmem_limit,
        ),
    )(x_p, *flat_params)

    return out[:batch, :out_dim]


_forward_jit = jax.jit(_forward_impl, static_argnames=("out_dim", "tile_b"))


def fnn_regressor_forward(x, prepared, *, tile_b: int = 512):
    """Fused forward pass.  `prepared` is the output of prepare_params()."""
    flat_params, out_dim = prepared
    return _forward_jit(x, flat_params, out_dim=out_dim, tile_b=tile_b)


def init_params(key, input_size, hidden_sizes, output_size, dtype=jnp.float32):
    """Deterministic init mimicking PyTorch Linear shapes: W is (out, in)."""
    sizes = [input_size] + list(hidden_sizes) + [output_size]
    params = []
    for i in range(len(sizes) - 1):
        fan_in, fan_out = sizes[i], sizes[i + 1]
        key, kw, kb = jax.random.split(key, 3)
        bound = 1.0 / (fan_in ** 0.5)  # PyTorch default uniform bound
        w = jax.random.uniform(kw, (fan_out, fan_in), dtype, -bound, bound)
        b = jax.random.uniform(kb, (fan_out,), dtype, -bound, bound)
        params.append((w, b))
    return params


def reference_forward(x, params):
    """Plain-JAX f32 reference for correctness check."""
    n = len(params)
    for idx, (w, b) in enumerate(params):
        x = x @ w.T + b
        if idx < n - 1:
            x = jnp.maximum(x, 0.0)
    return x


if __name__ == "__main__":
    input_size = 16
    hidden_sizes = [32, 64]
    output_size = 4
    batch = 8

    key = jax.random.PRNGKey(0)
    key, kx = jax.random.split(key)
    x = jax.random.normal(kx, (batch, input_size), jnp.float32)
    params = init_params(key, input_size, hidden_sizes, output_size)

    prepared = prepare_params(params)              # one-time weight prep

    out = fnn_regressor_forward(x, prepared)
    out = jax.block_until_ready(out)

    ref = reference_forward(x, params)
    assert out.shape == (batch, output_size)
    # bf16 MXU operands (f32 accumulation) -> small rounding vs the f32 reference.
    assert jnp.allclose(out, ref, atol=3e-2, rtol=3e-2), float(jnp.max(jnp.abs(out - ref)))

    print("KERNEL_OK")
</pallas_src>

<mosaic_0001>
module attributes {stable_mosaic.version = 11 : i64} {
  func.func @_fnn_fused_kernel(%arg0: i32, %arg1: memref<8x128xf32, #tpu.memory_space<vmem>>, %arg2: memref<128x128xbf16, #tpu.memory_space<vmem>>, %arg3: memref<1x128xf32, #tpu.memory_space<vmem>>, %arg4: memref<128x128xbf16, #tpu.memory_space<vmem>>, %arg5: memref<1x128xf32, #tpu.memory_space<vmem>>, %arg6: memref<128x128xbf16, #tpu.memory_space<vmem>>, %arg7: memref<1x128xf32, #tpu.memory_space<vmem>>, %arg8: memref<8x128xf32, #tpu.memory_space<vmem>>) attributes {dimension_semantics = [#tpu.dimension_semantics<parallel>], iteration_bounds = array<i64: 1>, scalar_prefetch = 0 : i64, scratch_operands = 0 : i64, tpu.core_type = #tpu.core_type<tc>, window_params = [{transform_indices = @transform_0, window_bounds = array<i64: 8, 128>}, {pipeline_mode = #tpu.pipeline_mode<synchronous>, transform_indices = @transform_1, window_bounds = array<i64: 128, 128>}, {pipeline_mode = #tpu.pipeline_mode<synchronous>, transform_indices = @transform_2, window_bounds = array<i64: 1, 128>}, {pipeline_mode = #tpu.pipeline_mode<synchronous>, transform_indices = @transform_3, window_bounds = array<i64: 128, 128>}, {pipeline_mode = #tpu.pipeline_mode<synchronous>, transform_indices = @transform_4, window_bounds = array<i64: 1, 128>}, {pipeline_mode = #tpu.pipeline_mode<synchronous>, transform_indices = @transform_5, window_bounds = array<i64: 128, 128>}, {pipeline_mode = #tpu.pipeline_mode<synchronous>, transform_indices = @transform_6, window_bounds = array<i64: 1, 128>}, {transform_indices = @transform_7, window_bounds = array<i64: 8, 128>}]} {
    %c0 = arith.constant 0 : index
    %c0_0 = arith.constant 0 : index
    %0 = vector.load %arg1[%c0, %c0_0] : memref<8x128xf32, #tpu.memory_space<vmem>>, vector<8x128xf32>
    %1 = arith.truncf %0 : vector<8x128xf32> to vector<8x128xbf16>
    %c0_1 = arith.constant 0 : index
    %c0_2 = arith.constant 0 : index
    %2 = vector.load %arg2[%c0_1, %c0_2] : memref<128x128xbf16, #tpu.memory_space<vmem>>, vector<128x128xbf16>
    %c0_3 = arith.constant 0 : index
    %c0_4 = arith.constant 0 : index
    %3 = vector.load %arg3[%c0_3, %c0_4] : memref<1x128xf32, #tpu.memory_space<vmem>>, vector<1x128xf32>
    %cst = arith.constant dense<0.000000e+00> : vector<8x128xf32>
    %4 = tpu.matmul %1, %2, %cst {dimension_numbers = #tpu.dot_dimension_numbers<[1], [0], [0], [1], [0, 0, 1, 1], [], []>} : vector<8x128xbf16>, vector<128x128xbf16>, vector<8x128xf32> -> vector<8x128xf32>
    %5 = vector.broadcast %3 : vector<1x128xf32> to vector<8x128xf32>
    %6 = arith.addf %4, %5 : vector<8x128xf32>
    %cst_5 = arith.constant 0.000000e+00 : f32
    %7 = vector.broadcast %cst_5 : f32 to vector<8x128xf32>
    %8 = arith.maximumf %6, %7 : vector<8x128xf32>
    %9 = arith.truncf %8 : vector<8x128xf32> to vector<8x128xbf16>
    %c0_6 = arith.constant 0 : index
    %c0_7 = arith.constant 0 : index
    %10 = vector.load %arg4[%c0_6, %c0_7] : memref<128x128xbf16, #tpu.memory_space<vmem>>, vector<128x128xbf16>
    %c0_8 = arith.constant 0 : index
    %c0_9 = arith.constant 0 : index
    %11 = vector.load %arg5[%c0_8, %c0_9] : memref<1x128xf32, #tpu.memory_space<vmem>>, vector<1x128xf32>
    %cst_10 = arith.constant dense<0.000000e+00> : vector<8x128xf32>
    %12 = tpu.matmul %9, %10, %cst_10 {dimension_numbers = #tpu.dot_dimension_numbers<[1], [0], [0], [1], [0, 0, 1, 1], [], []>} : vector<8x128xbf16>, vector<128x128xbf16>, vector<8x128xf32> -> vector<8x128xf32>
    %13 = vector.broadcast %11 : vector<1x128xf32> to vector<8x128xf32>
    %14 = arith.addf %12, %13 : vector<8x128xf32>
    %cst_11 = arith.constant 0.000000e+00 : f32
    %15 = vector.broadcast %cst_11 : f32 to vector<8x128xf32>
    %16 = arith.maximumf %14, %15 : vector<8x128xf32>
    %17 = arith.truncf %16 : vector<8x128xf32> to vector<8x128xbf16>
    %c0_12 = arith.constant 0 : index
    %c0_13 = arith.constant 0 : index
    %18 = vector.load %arg6[%c0_12, %c0_13] : memref<128x128xbf16, #tpu.memory_space<vmem>>, vector<128x128xbf16>
    %c0_14 = arith.constant 0 : index
    %c0_15 = arith.constant 0 : index
    %19 = vector.load %arg7[%c0_14, %c0_15] : memref<1x128xf32, #tpu.memory_space<vmem>>, vector<1x128xf32>
    %cst_16 = arith.constant dense<0.000000e+00> : vector<8x128xf32>
    %20 = tpu.matmul %17, %18, %cst_16 {dimension_numbers = #tpu.dot_dimension_numbers<[1], [0], [0], [1], [0, 0, 1, 1], [], []>} : vector<8x128xbf16>, vector<128x128xbf16>, vector<8x128xf32> -> vector<8x128xf32>
    %21 = vector.broadcast %19 : vector<1x128xf32> to vector<8x128xf32>
    %22 = arith.addf %20, %21 : vector<8x128xf32>
    %c0_17 = arith.constant 0 : index
    %c0_18 = arith.constant 0 : index
    %23 = vector.load %arg8[%c0_17, %c0_18] : memref<8x128xf32, #tpu.memory_space<vmem>>, vector<8x128xf32>
    tpu.vector_store %arg8[%c0_17, %c0_18], %22 {strides = array<i32>} : memref<8x128xf32, #tpu.memory_space<vmem>>, vector<8x128xf32>,
    return
  }
  func.func @transform_0(%arg0: i32) -> (i32, i32) {
    %c0_i32 = arith.constant 0 : i32
    %c0_i32_0 = arith.constant 0 : i32
    return %arg0, %c0_i32 : i32, i32
  }
  func.func @transform_1(%arg0: i32) -> (i32, i32) {
    %c0_i32 = arith.constant 0 : i32
    %c0_i32_0 = arith.constant 0 : i32
    %c0_i32_1 = arith.constant 0 : i32
    return %c0_i32, %c0_i32_0 : i32, i32
  }
  func.func @transform_2(%arg0: i32) -> (i32, i32) {
    %c0_i32 = arith.constant 0 : i32
    %c0_i32_0 = arith.constant 0 : i32
    %c0_i32_1 = arith.constant 0 : i32
    return %c0_i32, %c0_i32_0 : i32, i32
  }
  func.func @transform_3(%arg0: i32) -> (i32, i32) {
    %c0_i32 = arith.constant 0 : i32
    %c0_i32_0 = arith.constant 0 : i32
    %c0_i32_1 = arith.constant 0 : i32
    return %c0_i32, %c0_i32_0 : i32, i32
  }
  func.func @transform_4(%arg0: i32) -> (i32, i32) {
    %c0_i32 = arith.constant 0 : i32
    %c0_i32_0 = arith.constant 0 : i32
    %c0_i32_1 = arith.constant 0 : i32
    return %c0_i32, %c0_i32_0 : i32, i32
  }
  func.func @transform_5(%arg0: i32) -> (i32, i32) {
    %c0_i32 = arith.constant 0 : i32
    %c0_i32_0 = arith.constant 0 : i32
    %c0_i32_1 = arith.constant 0 : i32
    return %c0_i32, %c0_i32_0 : i32, i32
  }
  func.func @transform_6(%arg0: i32) -> (i32, i32) {
    %c0_i32 = arith.constant 0 : i32
    %c0_i32_0 = arith.constant 0 : i32
    %c0_i32_1 = arith.constant 0 : i32
    return %c0_i32, %c0_i32_0 : i32, i32
  }
  func.func @transform_7(%arg0: i32) -> (i32, i32) {
    %c0_i32 = arith.constant 0 : i32
    %c0_i32_0 = arith.constant 0 : i32
    return %arg0, %c0_i32 : i32, i32
  }
}

</mosaic_0001>

<llo_original>
// kernel: _forward_impl.1
$region0: #{_forward_impl.1}
  #allocation0 [shape = 'u32[]', space=smem, size = 0x4, offset = 0x4, fixed_abs, tag = 'smem constant byte address 0x4 - core index']
  #allocation1 [shape = 'u32[72,128]{1,0:T(1,128)}', space=vmem, size = 0x9000, scoped, tag = 'internal scratch']
  %s0 = inlined_call_operand.vmem [shape: f32[8,128], index: 0, kind: input, shape index: {}]
  %s1 = inlined_call_operand.hbm [shape: bf16[128,128], index: 1, kind: input, shape index: {}]
  %s2 = inlined_call_operand.vmem [shape: f32[1,128], index: 2, kind: input, shape index: {}]
  %s3 = inlined_call_operand.hbm [shape: bf16[128,128], index: 3, kind: input, shape index: {}]
  %s4 = inlined_call_operand.vmem [shape: f32[1,128], index: 4, kind: input, shape index: {}]
  %s5 = inlined_call_operand.hbm [shape: bf16[128,128], index: 5, kind: input, shape index: {}]
  %s6 = inlined_call_operand.vmem [shape: f32[1,128], index: 6, kind: input, shape index: {}]
  %s7 = inlined_call_operand.vmem [shape: f32[8,128], index: 7, kind: output, shape index: {}]
  %s8 = sld [smem:[#allocation0]]
  $region50: #{_forward_impl.1} parent=0
    _
  %s10 = ssub.s32 1, %s8
  %s11 = scalar_select 0, %s10, %s8
  $region1: #{_forward_impl.1} parent=0
    #allocation2 [shape = 'u8[32768]{0}', space=vmem, size = 0x8000, scoped, tag = 'input window, operand 1, single buffered']
    #allocation3 [shape = 's32[1]{0}', space=sflag, size = 0x4, scoped, tag = 'scoped memory for _forward_impl.1']
    #allocation4 [shape = 'u8[32768]{0}', space=vmem, size = 0x8000, scoped, tag = 'input window, operand 3, single buffered']
    #allocation5 [shape = 's32[1]{0}', space=sflag, size = 0x4, scoped, tag = 'scoped memory for _forward_impl.1']
    #allocation6 [shape = 'u8[32768]{0}', space=vmem, size = 0x8000, scoped, tag = 'input window, operand 5, single buffered']
    %12 = vsyncpa [#allocation3], 0
    %13 = vsyncpa [#allocation5], 0
    // Predicated region
    $region2: #{_forward_impl.1} parent=1 // pred_check
      _
    $region3: #{_forward_impl.1} parent=1 // pred_check_branch
      %15 = sbr.rel (0) target = $region5
    $region4: #{_forward_impl.1} parent=1 // pred_region
      _
    $region5: #{_forward_impl.1} parent=1 // pred_fallthru
      _
    // Predicated region
    $region6: #{_forward_impl.1} parent=1 // pred_check
      _
    $region7: #{_forward_impl.1} parent=1 // pred_check_branch
      %17 = sbr.rel (0) target = $region9
    $region8: #{_forward_impl.1} parent=1 // pred_region
      %19 = vsyncadd [#allocation3], 0
      %s20 = sshll.u32 %s1, 4
      %s21 = int_to_ptr.hbm [resolvable:$true] %s20
      %s22 = sshll.u32 [#allocation2], 4
      %s23 = int_to_ptr.vmem [resolvable:$true] %s22
      %28 = dma.hbm_to_vmem [thread:$0]  %s21, 1024, %s23, [#allocation3], 64, 64, 4
    $region9: #{_forward_impl.1} parent=1 // pred_fallthru
      _
    // Predicated region
    $region10: #{_forward_impl.1} parent=1 // pred_check
      _
    $region11: #{_forward_impl.1} parent=1 // pred_check_branch
      %30 = sbr.rel (0) target = $region13
    $region12: #{_forward_impl.1} parent=1 // pred_region
      _
    $region13: #{_forward_impl.1} parent=1 // pred_fallthru
      _
    // Predicated region
    $region14: #{_forward_impl.1} parent=1 // pred_check
      _
    $region15: #{_forward_impl.1} parent=1 // pred_check_branch
      %32 = sbr.rel (0) target = $region17
    $region16: #{_forward_impl.1} parent=1 // pred_region
      %34 = vsyncadd [#allocation5], 0
      %s35 = sshll.u32 %s3, 4
      %s36 = int_to_ptr.hbm [resolvable:$true] %s35
      %s37 = sshll.u32 [#allocation4], 4
      %s38 = int_to_ptr.vmem [resolvable:$true] %s37
      %43 = dma.hbm_to_vmem [thread:$0]  %s36, 1024, %s38, [#allocation5], 64, 64, 4
    $region17: #{_forward_impl.1} parent=1 // pred_fallthru
      _
    // Predicated region
    $region18: #{_forward_impl.1} parent=1 // pred_check
      _
    $region19: #{_forward_impl.1} parent=1 // pred_check_branch
      %45 = sbr.rel (0) target = $region21
    $region20: #{_forward_impl.1} parent=1 // pred_region
      _
    $region21: #{_forward_impl.1} parent=1 // pred_fallthru
      _
    // Predicated region
    $region22: #{_forward_impl.1} parent=1 // pred_check
      _
    $region23: #{_forward_impl.1} parent=1 // pred_check_branch
      %47 = sbr.rel (0) target = $region25
    $region24: #{_forward_impl.1} parent=1 // pred_region
      %49 = vsyncadd [#allocation5], 0
      %s50 = sshll.u32 %s5, 4
      %s51 = int_to_ptr.hbm [resolvable:$true] %s50
      %s52 = sshll.u32 [#allocation6], 4
      %s53 = int_to_ptr.vmem [resolvable:$true] %s52
      %58 = dma.hbm_to_vmem [thread:$0]  %s51, 1024, %s53, [#allocation5], 64, 64, 4
    $region25: #{_forward_impl.1} parent=1 // pred_fallthru
      _
    // Predicated region
    $region26: #{_forward_impl.1} parent=1 // pred_check
      _
    $region27: #{_forward_impl.1} parent=1 // pred_check_branch
      %60 = sbr.rel (0) target = $region29
    $region28: #{_forward_impl.1} parent=1 // pred_region
      _
    $region29: #{_forward_impl.1} parent=1 // pred_fallthru
      _
    // Predicated region
    $region30: #{_forward_impl.1} parent=1 // pred_check
      _
    $region31: #{_forward_impl.1} parent=1 // pred_check_branch
      %62 = sbr.rel (0) target = $region33
    $region32: #{_forward_impl.1} parent=1 // pred_region
      %64 = dma.done [#allocation3], 1024
    $region33: #{_forward_impl.1} parent=1 // pred_fallthru
      _
    // Predicated region
    $region34: #{_forward_impl.1} parent=1 // pred_check
      _
    $region35: #{_forward_impl.1} parent=1 // pred_check_branch
      %66 = sbr.rel (0) target = $region37
    $region36: #{_forward_impl.1} parent=1 // pred_region
      %68 = dma.done [#allocation5], 1024
    $region37: #{_forward_impl.1} parent=1 // pred_fallthru
      _
    // Predicated region
    $region38: #{_forward_impl.1} parent=1 // pred_check
      _
    $region39: #{_forward_impl.1} parent=1 // pred_check_branch
      %70 = sbr.rel (0) target = $region41
    $region40: #{_forward_impl.1} parent=1 // pred_region
      %72 = dma.done [#allocation5], 1024
    $region41: #{_forward_impl.1} parent=1 // pred_fallthru
      _
    %v73 = vld [vmem:[%s0] sm:$0xff]
    %v74 = vpack.c.bf16 %v73, %v73
    %v75 = vld [vmem:[#allocation2] sm:$0xf]
    %v76 = vld [vmem:[#allocation2 + $0x4] sm:$0xf]
    %v77 = vld [vmem:[#allocation2 + $0x8] sm:$0xf]
    %v78 = vld [vmem:[#allocation2 + $0xc] sm:$0xf]
    %v79 = vld [vmem:[#allocation2 + $0x10] sm:$0xf]
    %v80 = vld [vmem:[#allocation2 + $0x14] sm:$0xf]
    %v81 = vld [vmem:[#allocation2 + $0x18] sm:$0xf]
    %v82 = vld [vmem:[#allocation2 + $0x1c] sm:$0xf]
    %v83 = vld [vmem:[#allocation2 + $0x20] sm:$0xf]
    %v84 = vld [vmem:[#allocation2 + $0x24] sm:$0xf]
    %v85 = vld [vmem:[#allocation2 + $0x28] sm:$0xf]
    %v86 = vld [vmem:[#allocation2 + $0x2c] sm:$0xf]
    %v87 = vld [vmem:[#allocation2 + $0x30] sm:$0xf]
    %v88 = vld [vmem:[#allocation2 + $0x34] sm:$0xf]
    %v89 = vld [vmem:[#allocation2 + $0x38] sm:$0xf]
    %v90 = vld [vmem:[#allocation2 + $0x3c] sm:$0xf]
    %v91 = vld [vmem:[%s2] sm:$0x1]
    %v93 = vperm.slane %v91, 0
    %v111 = vunpack.c.l.b16 %v75
    %v112 = vunpack.c.l.b16 %v76
    %v113 = vunpack.c.l.b16 %v77
    %v114 = vunpack.c.l.b16 %v78
    %v115 = vunpack.c.l.b16 %v79
    %v116 = vunpack.c.l.b16 %v80
    %v117 = vunpack.c.l.b16 %v81
    %v118 = vunpack.c.l.b16 %v82
    %v119 = vunpack.c.l.b16 %v83
    %v120 = vunpack.c.l.b16 %v84
    %v121 = vunpack.c.l.b16 %v85
    %v122 = vunpack.c.l.b16 %v86
    %v123 = vunpack.c.l.b16 %v87
    %v124 = vunpack.c.l.b16 %v88
    %v125 = vunpack.c.l.b16 %v89
    %v126 = vunpack.c.l.b16 %v90
    %v127 = vpack.c.b16 %v112, %v111
    %v128 = vpack.c.b16 %v114, %v113
    %v129 = vpack.c.b16 %v116, %v115
    %v130 = vpack.c.b16 %v118, %v117
    %v131 = vpack.c.b16 %v120, %v119
    %v132 = vpack.c.b16 %v122, %v121
    %v133 = vpack.c.b16 %v124, %v123
    %v134 = vpack.c.b16 %v126, %v125
    %143 = vmatpush.bf16.msra.mxu0 %v134
    %144 = vmatpush.bf16.msra.mxu0 %v133
    %145 = vmatpush.bf16.msra.mxu0 %v132
    %146 = vmatpush.bf16.msra.mxu0 %v131
    %147 = vmatpush.bf16.msra.mxu0 %v130
    %148 = vmatpush.bf16.msra.mxu0 %v129
    %149 = vmatpush.bf16.msra.mxu0 %v128
    %150 = vmatpush.bf16.msra.mxu0 %v127
    %151 = vmatmul.bf16.gmra.mxu0 %v74
    %v152 = vpop.f32.mrf.mxu0
    %v153 = vadd.f32 %v93, %v152
    %v154 = vpop.f32.mrf.mxu0
    %155 = vdwg.mxu0
    %v156 = vmax.f32 %v153, 0.0
    %v157 = vpack.c.bf16 %v156, %v156
    %v158 = vld [vmem:[#allocation4] sm:$0xf]
    %v159 = vld [vmem:[#allocation4 + $0x4] sm:$0xf]
    %v160 = vld [vmem:[#allocation4 + $0x8] sm:$0xf]
    %v161 = vld [vmem:[#allocation4 + $0xc] sm:$0xf]
    %v162 = vld [vmem:[#allocation4 + $0x10] sm:$0xf]
    %v163 = vld [vmem:[#allocation4 + $0x14] sm:$0xf]
    %v164 = vld [vmem:[#allocation4 + $0x18] sm:$0xf]
    %v165 = vld [vmem:[#allocation4 + $0x1c] sm:$0xf]
    %v166 = vld [vmem:[#allocation4 + $0x20] sm:$0xf]
    %v167 = vld [vmem:[#allocation4 + $0x24] sm:$0xf]
    %v168 = vld [vmem:[#allocation4 + $0x28] sm:$0xf]
    %v169 = vld [vmem:[#allocation4 + $0x2c] sm:$0xf]
    %v170 = vld [vmem:[#allocation4 + $0x30] sm:$0xf]
    %v171 = vld [vmem:[#allocation4 + $0x34] sm:$0xf]
    %v172 = vld [vmem:[#allocation4 + $0x38] sm:$0xf]
    %v173 = vld [vmem:[#allocation4 + $0x3c] sm:$0xf]
    %v174 = vld [vmem:[%s4] sm:$0x1]
    %v176 = vperm.slane %v174, 0
    %v194 = vunpack.c.l.b16 %v158
    %v195 = vunpack.c.l.b16 %v159
    %v196 = vunpack.c.l.b16 %v160
    %v197 = vunpack.c.l.b16 %v161
    %v198 = vunpack.c.l.b16 %v162
    %v199 = vunpack.c.l.b16 %v163
    %v200 = vunpack.c.l.b16 %v164
    %v201 = vunpack.c.l.b16 %v165
    %v202 = vunpack.c.l.b16 %v166
    %v203 = vunpack.c.l.b16 %v167
    %v204 = vunpack.c.l.b16 %v168
    %v205 = vunpack.c.l.b16 %v169
    %v206 = vunpack.c.l.b16 %v170
    %v207 = vunpack.c.l.b16 %v171
    %v208 = vunpack.c.l.b16 %v172
    %v209 = vunpack.c.l.b16 %v173
    %v210 = vpack.c.b16 %v195, %v194
    %v211 = vpack.c.b16 %v197, %v196
    %v212 = vpack.c.b16 %v199, %v198
    %v213 = vpack.c.b16 %v201, %v200
    %v214 = vpack.c.b16 %v203, %v202
    %v215 = vpack.c.b16 %v205, %v204
    %v216 = vpack.c.b16 %v207, %v206
    %v217 = vpack.c.b16 %v209, %v208
    %226 = vmatpush.bf16.msra.mxu0 %v217
    %227 = vmatpush.bf16.msra.mxu0 %v216
    %228 = vmatpush.bf16.msra.mxu0 %v215
    %229 = vmatpush.bf16.msra.mxu0 %v214
    %230 = vmatpush.bf16.msra.mxu0 %v213
    %231 = vmatpush.bf16.msra.mxu0 %v212
    %232 = vmatpush.bf16.msra.mxu0 %v211
    %233 = vmatpush.bf16.msra.mxu0 %v210
    %234 = vmatmul.bf16.gmra.mxu0 %v157
    %v235 = vpop.f32.mrf.mxu0
    %v236 = vadd.f32 %v176, %v235
    %v237 = vpop.f32.mrf.mxu0
    %238 = vdwg.mxu0
    %v239 = vmax.f32 %v236, 0.0
    %v240 = vpack.c.bf16 %v239, %v239
    %v241 = vld [vmem:[#allocation6] sm:$0xf]
    %v242 = vld [vmem:[#allocation6 + $0x4] sm:$0xf]
    %v243 = vld [vmem:[#allocation6 + $0x8] sm:$0xf]
    %v244 = vld [vmem:[#allocation6 + $0xc] sm:$0xf]
    %v245 = vld [vmem:[#allocation6 + $0x10] sm:$0xf]
    %v246 = vld [vmem:[#allocation6 + $0x14] sm:$0xf]
    %v247 = vld [vmem:[#allocation6 + $0x18] sm:$0xf]
    %v248 = vld [vmem:[#allocation6 + $0x1c] sm:$0xf]
    %v249 = vld [vmem:[#allocation6 + $0x20] sm:$0xf]
    %v250 = vld [vmem:[#allocation6 + $0x24] sm:$0xf]
    %v251 = vld [vmem:[#allocation6 + $0x28] sm:$0xf]
    %v252 = vld [vmem:[#allocation6 + $0x2c] sm:$0xf]
    %v253 = vld [vmem:[#allocation6 + $0x30] sm:$0xf]
    %v254 = vld [vmem:[#allocation6 + $0x34] sm:$0xf]
    %v255 = vld [vmem:[#allocation6 + $0x38] sm:$0xf]
    %v256 = vld [vmem:[#allocation6 + $0x3c] sm:$0xf]
    %v257 = vld [vmem:[%s6] sm:$0x1]
    %v259 = vperm.slane %v257, 0
    %v277 = vunpack.c.l.b16 %v241
    %v278 = vunpack.c.l.b16 %v242
    %v279 = vunpack.c.l.b16 %v243
    %v280 = vunpack.c.l.b16 %v244
    %v281 = vunpack.c.l.b16 %v245
    %v282 = vunpack.c.l.b16 %v246
    %v283 = vunpack.c.l.b16 %v247
    %v284 = vunpack.c.l.b16 %v248
    %v285 = vunpack.c.l.b16 %v249
    %v286 = vunpack.c.l.b16 %v250
    %v287 = vunpack.c.l.b16 %v251
    %v288 = vunpack.c.l.b16 %v252
    %v289 = vunpack.c.l.b16 %v253
    %v290 = vunpack.c.l.b16 %v254
    %v291 = vunpack.c.l.b16 %v255
    %v292 = vunpack.c.l.b16 %v256
    %v293 = vpack.c.b16 %v278, %v277
    %v294 = vpack.c.b16 %v280, %v279
    %v295 = vpack.c.b16 %v282, %v281
    %v296 = vpack.c.b16 %v284, %v283
    %v297 = vpack.c.b16 %v286, %v285
    %v298 = vpack.c.b16 %v288, %v287
    %v299 = vpack.c.b16 %v290, %v289
    %v300 = vpack.c.b16 %v292, %v291
    %309 = vmatpush.bf16.msra.mxu0 %v300
    %310 = vmatpush.bf16.msra.mxu0 %v299
    %311 = vmatpush.bf16.msra.mxu0 %v298
    %312 = vmatpush.bf16.msra.mxu0 %v297
    %313 = vmatpush.bf16.msra.mxu0 %v296
    %314 = vmatpush.bf16.msra.mxu0 %v295
    %315 = vmatpush.bf16.msra.mxu0 %v294
    %316 = vmatpush.bf16.msra.mxu0 %v293
    %317 = vmatmul.bf16.gmra.mxu0 %v240
    %v318 = vpop.f32.mrf.mxu0
    %v319 = vadd.f32 %v259, %v318
    %v320 = vpop.f32.mrf.mxu0
    %321 = vdwg.mxu0
    %322 = vst [vmem:[%s7] sm:$0xff] %v319
    // Predicated region
    $region42: #{_forward_impl.1} parent=1 // pred_check
      _
    $region43: #{_forward_impl.1} parent=1 // pred_check_branch
      %324 = sbr.rel (0) target = $region45
    $region44: #{_forward_impl.1} parent=1 // pred_region
      _
    $region45: #{_forward_impl.1} parent=1 // pred_fallthru
      _
    // Predicated region
    $region46: #{_forward_impl.1} parent=1 // pred_check
      _
    $region47: #{_forward_impl.1} parent=1 // pred_check_branch
      %326 = sbr.rel (0) target = $region49
    $region48: #{_forward_impl.1} parent=1 // pred_region
      _
    $region49: #{_forward_impl.1} parent=1 // pred_fallthru
      _
    %327 = vsyncpa [#allocation3], 1
    %328 = vsyncpa [#allocation5], 1

</llo_original>
